<compile_context>
chip_gen: v6e
topology: v6e:2x2x1
jax: 0.10.0
libtpu: 0.0.40
codegen_flags: <defaults>
</compile_context>

<pallas_src>
import jax
import jax.numpy as jnp
from jax.experimental import pallas as pl
from jax.experimental.pallas import tpu as pltpu

IN_FEATURES = 5
HIDDEN = 8
OUT_FEATURES = 1
LANE = 128


def _make_kernel(in_f, hid):
    def kernel(x_ref, w1_ref, b1_ref, w2_ref, b2_ref, o_ref):
        # x_ref: (in_f, TILE_B) VMEM, batch along lanes.
        # w1_ref: (hid*in_f,) SMEM (PyTorch fc1.weight row-major, [j, k]),
        # b1_ref: (hid,) SMEM, w2_ref: (hid,) SMEM, b2_ref: (1,) SMEM.
        xrows = [x_ref[k:k + 1, :] for k in range(in_f)]      # in_f x (1, TILE_B)
        y = jnp.zeros_like(xrows[0])                          # (1, TILE_B) f32
        for j in range(hid):
            h = jnp.full_like(xrows[0], b1_ref[j])            # bias broadcast
            for k in range(in_f):
                h = h + w1_ref[j * in_f + k] * xrows[k]       # VPU FMA
            h = jnp.maximum(h, 0.0)                           # ReLU
            y = y + w2_ref[j] * h                             # fc2 FMA
        o_ref[...] = (y + b2_ref[0]).astype(o_ref.dtype)
    return kernel


def amodel_forward(x, fc1_w, fc1_b, fc2_w, fc2_b, *, tile_b=32768):
    """Forward pass of AModel.

    x:     (B, 5)  float32
    fc1_w: (8, 5)  float32  (PyTorch layout: out x in)
    fc1_b: (8,)    float32
    fc2_w: (1, 8)  float32
    fc2_b: (1,)    float32
    returns (B, 1) float32
    """
    B = x.shape[0]

    # Pad batch to a lane-dense multiple of the tile; cap the tile for tiny B.
    b_pad = max(LANE, pl.cdiv(B, LANE) * LANE)
    tile_b = min(tile_b, b_pad)
    b_pad = pl.cdiv(b_pad, tile_b) * tile_b

    # One-time re-layout: batch on lanes (feature-major).
    xt = jnp.zeros((IN_FEATURES, b_pad), jnp.float32).at[:, :B].set(
        x.astype(jnp.float32).T)

    w1_flat = fc1_w.reshape(-1).astype(jnp.float32)   # (40,), index j*5 + k
    b1 = fc1_b.reshape(-1).astype(jnp.float32)        # (8,)
    w2_flat = fc2_w.reshape(-1).astype(jnp.float32)   # (8,)
    b2 = fc2_b.reshape(-1).astype(jnp.float32)        # (1,)

    num_tiles = b_pad // tile_b
    smem_spec = pl.BlockSpec(memory_space=pltpu.MemorySpace.SMEM)

    out = pl.pallas_call(
        _make_kernel(IN_FEATURES, HIDDEN),
        out_shape=jax.ShapeDtypeStruct((OUT_FEATURES, b_pad), jnp.float32),
        grid=(num_tiles,),
        in_specs=[
            pl.BlockSpec((IN_FEATURES, tile_b), lambda i: (0, i)),
            smem_spec,  # w1
            smem_spec,  # b1
            smem_spec,  # w2
            smem_spec,  # b2
        ],
        out_specs=pl.BlockSpec((OUT_FEATURES, tile_b), lambda i: (0, i)),
        compiler_params=pltpu.CompilerParams(
            dimension_semantics=("parallel",),
        ),
        cost_estimate=pl.CostEstimate(
            flops=2 * (IN_FEATURES * HIDDEN + HIDDEN) * b_pad,
            transcendentals=0,
            bytes_accessed=(IN_FEATURES + OUT_FEATURES) * 4 * b_pad,
        ),
    )(xt, w1_flat, b1, w2_flat, b2)

    # (1, b_pad) -> (B, 1): drop padding lanes, row-major reshape (free).
    return out[0, :B].reshape(B, 1)


def init_params(key):
    """Deterministic synthetic parameters in PyTorch's Linear layout."""
    k1, k2, k3, k4 = jax.random.split(key, 4)
    fc1_w = jax.random.normal(k1, (HIDDEN, IN_FEATURES), jnp.float32) * 0.1
    fc1_b = jax.random.normal(k2, (HIDDEN,), jnp.float32) * 0.1
    fc2_w = jax.random.normal(k3, (OUT_FEATURES, HIDDEN), jnp.float32) * 0.1
    fc2_b = jax.random.normal(k4, (OUT_FEATURES,), jnp.float32) * 0.1
    return fc1_w, fc1_b, fc2_w, fc2_b


if __name__ == "__main__":
    key = jax.random.PRNGKey(0)
    kx, kp = jax.random.split(key)

    batch = 8
    x = jax.random.normal(kx, (batch, IN_FEATURES), dtype=jnp.float32)
    fc1_w, fc1_b, fc2_w, fc2_b = init_params(kp)

    out = amodel_forward(x, fc1_w, fc1_b, fc2_w, fc2_b)
    out = jax.block_until_ready(out)

    # Reference in plain JAX (same math as the PyTorch forward).
    ref = jnp.maximum(x @ fc1_w.T + fc1_b, 0.0) @ fc2_w.T + fc2_b
    assert out.shape == (batch, OUT_FEATURES)
    assert jnp.allclose(out, ref, atol=1e-5, rtol=1e-5)

    print("KERNEL_OK")
</pallas_src>

<mosaic_0001>
module attributes {stable_mosaic.version = 11 : i64} {
  func.func @kernel(%arg0: i32, %arg1: memref<5x128xf32, #tpu.memory_space<vmem>>, %arg2: memref<40xf32, #tpu.memory_space<smem>>, %arg3: memref<8xf32, #tpu.memory_space<smem>>, %arg4: memref<8xf32, #tpu.memory_space<smem>>, %arg5: memref<1xf32, #tpu.memory_space<smem>>, %arg6: memref<1x128xf32, #tpu.memory_space<vmem>>) attributes {dimension_semantics = [#tpu.dimension_semantics<parallel>], iteration_bounds = array<i64: 1>, scalar_prefetch = 0 : i64, scratch_operands = 0 : i64, tpu.core_type = #tpu.core_type<tc>, window_params = [{transform_indices = @transform_0, window_bounds = array<i64: 5, 128>}, {transform_indices = @transform_1, window_bounds = array<i64: 40>}, {transform_indices = @transform_2, window_bounds = array<i64: 8>}, {transform_indices = @transform_3, window_bounds = array<i64: 8>}, {transform_indices = @transform_4, window_bounds = array<i64: 1>}, {transform_indices = @transform_5, window_bounds = array<i64: 1, 128>}]} {
    %c0 = arith.constant 0 : index
    %c0_0 = arith.constant 0 : index
    %0 = vector.load %arg1[%c0, %c0_0] : memref<5x128xf32, #tpu.memory_space<vmem>>, vector<1x128xf32>
    %c1 = arith.constant 1 : index
    %c0_1 = arith.constant 0 : index
    %1 = vector.load %arg1[%c1, %c0_1] : memref<5x128xf32, #tpu.memory_space<vmem>>, vector<1x128xf32>
    %c2 = arith.constant 2 : index
    %c0_2 = arith.constant 0 : index
    %2 = vector.load %arg1[%c2, %c0_2] : memref<5x128xf32, #tpu.memory_space<vmem>>, vector<1x128xf32>
    %c3 = arith.constant 3 : index
    %c0_3 = arith.constant 0 : index
    %3 = vector.load %arg1[%c3, %c0_3] : memref<5x128xf32, #tpu.memory_space<vmem>>, vector<1x128xf32>
    %c4 = arith.constant 4 : index
    %c0_4 = arith.constant 0 : index
    %4 = vector.load %arg1[%c4, %c0_4] : memref<5x128xf32, #tpu.memory_space<vmem>>, vector<1x128xf32>
    %cst = arith.constant 0.000000e+00 : f32
    %5 = vector.broadcast %cst : f32 to vector<1x128xf32>
    %c0_5 = arith.constant 0 : index
    %6 = memref.load %arg3[%c0_5] : memref<8xf32, #tpu.memory_space<smem>>
    %7 = vector.broadcast %6 : f32 to vector<1x128xf32>
    %c0_6 = arith.constant 0 : index
    %8 = memref.load %arg2[%c0_6] : memref<40xf32, #tpu.memory_space<smem>>
    %9 = vector.broadcast %8 : f32 to vector<1x128xf32>
    %10 = arith.mulf %9, %0 : vector<1x128xf32>
    %11 = arith.addf %7, %10 : vector<1x128xf32>
    %c1_7 = arith.constant 1 : index
    %12 = memref.load %arg2[%c1_7] : memref<40xf32, #tpu.memory_space<smem>>
    %13 = vector.broadcast %12 : f32 to vector<1x128xf32>
    %14 = arith.mulf %13, %1 : vector<1x128xf32>
    %15 = arith.addf %11, %14 : vector<1x128xf32>
    %c2_8 = arith.constant 2 : index
    %16 = memref.load %arg2[%c2_8] : memref<40xf32, #tpu.memory_space<smem>>
    %17 = vector.broadcast %16 : f32 to vector<1x128xf32>
    %18 = arith.mulf %17, %2 : vector<1x128xf32>
    %19 = arith.addf %15, %18 : vector<1x128xf32>
    %c3_9 = arith.constant 3 : index
    %20 = memref.load %arg2[%c3_9] : memref<40xf32, #tpu.memory_space<smem>>
    %21 = vector.broadcast %20 : f32 to vector<1x128xf32>
    %22 = arith.mulf %21, %3 : vector<1x128xf32>
    %23 = arith.addf %19, %22 : vector<1x128xf32>
    %c4_10 = arith.constant 4 : index
    %24 = memref.load %arg2[%c4_10] : memref<40xf32, #tpu.memory_space<smem>>
    %25 = vector.broadcast %24 : f32 to vector<1x128xf32>
    %26 = arith.mulf %25, %4 : vector<1x128xf32>
    %27 = arith.addf %23, %26 : vector<1x128xf32>
    %cst_11 = arith.constant 0.000000e+00 : f32
    %28 = vector.broadcast %cst_11 : f32 to vector<1x128xf32>
    %29 = arith.maximumf %27, %28 : vector<1x128xf32>
    %c0_12 = arith.constant 0 : index
    %30 = memref.load %arg4[%c0_12] : memref<8xf32, #tpu.memory_space<smem>>
    %31 = vector.broadcast %30 : f32 to vector<1x128xf32>
    %32 = arith.mulf %31, %29 : vector<1x128xf32>
    %33 = arith.addf %5, %32 : vector<1x128xf32>
    %c1_13 = arith.constant 1 : index
    %34 = memref.load %arg3[%c1_13] : memref<8xf32, #tpu.memory_space<smem>>
    %35 = vector.broadcast %34 : f32 to vector<1x128xf32>
    %c5 = arith.constant 5 : index
    %36 = memref.load %arg2[%c5] : memref<40xf32, #tpu.memory_space<smem>>
    %37 = vector.broadcast %36 : f32 to vector<1x128xf32>
    %38 = arith.mulf %37, %0 : vector<1x128xf32>
    %39 = arith.addf %35, %38 : vector<1x128xf32>
    %c6 = arith.constant 6 : index
    %40 = memref.load %arg2[%c6] : memref<40xf32, #tpu.memory_space<smem>>
    %41 = vector.broadcast %40 : f32 to vector<1x128xf32>
    %42 = arith.mulf %41, %1 : vector<1x128xf32>
    %43 = arith.addf %39, %42 : vector<1x128xf32>
    %c7 = arith.constant 7 : index
    %44 = memref.load %arg2[%c7] : memref<40xf32, #tpu.memory_space<smem>>
    %45 = vector.broadcast %44 : f32 to vector<1x128xf32>
    %46 = arith.mulf %45, %2 : vector<1x128xf32>
    %47 = arith.addf %43, %46 : vector<1x128xf32>
    %c8 = arith.constant 8 : index
    %48 = memref.load %arg2[%c8] : memref<40xf32, #tpu.memory_space<smem>>
    %49 = vector.broadcast %48 : f32 to vector<1x128xf32>
    %50 = arith.mulf %49, %3 : vector<1x128xf32>
    %51 = arith.addf %47, %50 : vector<1x128xf32>
    %c9 = arith.constant 9 : index
    %52 = memref.load %arg2[%c9] : memref<40xf32, #tpu.memory_space<smem>>
    %53 = vector.broadcast %52 : f32 to vector<1x128xf32>
    %54 = arith.mulf %53, %4 : vector<1x128xf32>
    %55 = arith.addf %51, %54 : vector<1x128xf32>
    %cst_14 = arith.constant 0.000000e+00 : f32
    %56 = vector.broadcast %cst_14 : f32 to vector<1x128xf32>
    %57 = arith.maximumf %55, %56 : vector<1x128xf32>
    %c1_15 = arith.constant 1 : index
    %58 = memref.load %arg4[%c1_15] : memref<8xf32, #tpu.memory_space<smem>>
    %59 = vector.broadcast %58 : f32 to vector<1x128xf32>
    %60 = arith.mulf %59, %57 : vector<1x128xf32>
    %61 = arith.addf %33, %60 : vector<1x128xf32>
    %c2_16 = arith.constant 2 : index
    %62 = memref.load %arg3[%c2_16] : memref<8xf32, #tpu.memory_space<smem>>
    %63 = vector.broadcast %62 : f32 to vector<1x128xf32>
    %c10 = arith.constant 10 : index
    %64 = memref.load %arg2[%c10] : memref<40xf32, #tpu.memory_space<smem>>
    %65 = vector.broadcast %64 : f32 to vector<1x128xf32>
    %66 = arith.mulf %65, %0 : vector<1x128xf32>
    %67 = arith.addf %63, %66 : vector<1x128xf32>
    %c11 = arith.constant 11 : index
    %68 = memref.load %arg2[%c11] : memref<40xf32, #tpu.memory_space<smem>>
    %69 = vector.broadcast %68 : f32 to vector<1x128xf32>
    %70 = arith.mulf %69, %1 : vector<1x128xf32>
    %71 = arith.addf %67, %70 : vector<1x128xf32>
    %c12 = arith.constant 12 : index
    %72 = memref.load %arg2[%c12] : memref<40xf32, #tpu.memory_space<smem>>
    %73 = vector.broadcast %72 : f32 to vector<1x128xf32>
    %74 = arith.mulf %73, %2 : vector<1x128xf32>
    %75 = arith.addf %71, %74 : vector<1x128xf32>
    %c13 = arith.constant 13 : index
    %76 = memref.load %arg2[%c13] : memref<40xf32, #tpu.memory_space<smem>>
    %77 = vector.broadcast %76 : f32 to vector<1x128xf32>
    %78 = arith.mulf %77, %3 : vector<1x128xf32>
    %79 = arith.addf %75, %78 : vector<1x128xf32>
    %c14 = arith.constant 14 : index
    %80 = memref.load %arg2[%c14] : memref<40xf32, #tpu.memory_space<smem>>
    %81 = vector.broadcast %80 : f32 to vector<1x128xf32>
    %82 = arith.mulf %81, %4 : vector<1x128xf32>
    %83 = arith.addf %79, %82 : vector<1x128xf32>
    %cst_17 = arith.constant 0.000000e+00 : f32
    %84 = vector.broadcast %cst_17 : f32 to vector<1x128xf32>
    %85 = arith.maximumf %83, %84 : vector<1x128xf32>
    %c2_18 = arith.constant 2 : index
    %86 = memref.load %arg4[%c2_18] : memref<8xf32, #tpu.memory_space<smem>>
    %87 = vector.broadcast %86 : f32 to vector<1x128xf32>
    %88 = arith.mulf %87, %85 : vector<1x128xf32>
    %89 = arith.addf %61, %88 : vector<1x128xf32>
    %c3_19 = arith.constant 3 : index
    %90 = memref.load %arg3[%c3_19] : memref<8xf32, #tpu.memory_space<smem>>
    %91 = vector.broadcast %90 : f32 to vector<1x128xf32>
    %c15 = arith.constant 15 : index
    %92 = memref.load %arg2[%c15] : memref<40xf32, #tpu.memory_space<smem>>
    %93 = vector.broadcast %92 : f32 to vector<1x128xf32>
    %94 = arith.mulf %93, %0 : vector<1x128xf32>
    %95 = arith.addf %91, %94 : vector<1x128xf32>
    %c16 = arith.constant 16 : index
    %96 = memref.load %arg2[%c16] : memref<40xf32, #tpu.memory_space<smem>>
    %97 = vector.broadcast %96 : f32 to vector<1x128xf32>
    %98 = arith.mulf %97, %1 : vector<1x128xf32>
    %99 = arith.addf %95, %98 : vector<1x128xf32>
    %c17 = arith.constant 17 : index
    %100 = memref.load %arg2[%c17] : memref<40xf32, #tpu.memory_space<smem>>
    %101 = vector.broadcast %100 : f32 to vector<1x128xf32>
    %102 = arith.mulf %101, %2 : vector<1x128xf32>
    %103 = arith.addf %99, %102 : vector<1x128xf32>
    %c18 = arith.constant 18 : index
    %104 = memref.load %arg2[%c18] : memref<40xf32, #tpu.memory_space<smem>>
    %105 = vector.broadcast %104 : f32 to vector<1x128xf32>
    %106 = arith.mulf %105, %3 : vector<1x128xf32>
    %107 = arith.addf %103, %106 : vector<1x128xf32>
    %c19 = arith.constant 19 : index
    %108 = memref.load %arg2[%c19] : memref<40xf32, #tpu.memory_space<smem>>
    %109 = vector.broadcast %108 : f32 to vector<1x128xf32>
    %110 = arith.mulf %109, %4 : vector<1x128xf32>
    %111 = arith.addf %107, %110 : vector<1x128xf32>
    %cst_20 = arith.constant 0.000000e+00 : f32
    %112 = vector.broadcast %cst_20 : f32 to vector<1x128xf32>
    %113 = arith.maximumf %111, %112 : vector<1x128xf32>
    %c3_21 = arith.constant 3 : index
    %114 = memref.load %arg4[%c3_21] : memref<8xf32, #tpu.memory_space<smem>>
    %115 = vector.broadcast %114 : f32 to vector<1x128xf32>
    %116 = arith.mulf %115, %113 : vector<1x128xf32>
    %117 = arith.addf %89, %116 : vector<1x128xf32>
    %c4_22 = arith.constant 4 : index
    %118 = memref.load %arg3[%c4_22] : memref<8xf32, #tpu.memory_space<smem>>
    %119 = vector.broadcast %118 : f32 to vector<1x128xf32>
    %c20 = arith.constant 20 : index
    %120 = memref.load %arg2[%c20] : memref<40xf32, #tpu.memory_space<smem>>
    %121 = vector.broadcast %120 : f32 to vector<1x128xf32>
    %122 = arith.mulf %121, %0 : vector<1x128xf32>
    %123 = arith.addf %119, %122 : vector<1x128xf32>
    %c21 = arith.constant 21 : index
    %124 = memref.load %arg2[%c21] : memref<40xf32, #tpu.memory_space<smem>>
    %125 = vector.broadcast %124 : f32 to vector<1x128xf32>
    %126 = arith.mulf %125, %1 : vector<1x128xf32>
    %127 = arith.addf %123, %126 : vector<1x128xf32>
    %c22 = arith.constant 22 : index
    %128 = memref.load %arg2[%c22] : memref<40xf32, #tpu.memory_space<smem>>
    %129 = vector.broadcast %128 : f32 to vector<1x128xf32>
    %130 = arith.mulf %129, %2 : vector<1x128xf32>
    %131 = arith.addf %127, %130 : vector<1x128xf32>
    %c23 = arith.constant 23 : index
    %132 = memref.load %arg2[%c23] : memref<40xf32, #tpu.memory_space<smem>>
    %133 = vector.broadcast %132 : f32 to vector<1x128xf32>
    %134 = arith.mulf %133, %3 : vector<1x128xf32>
    %135 = arith.addf %131, %134 : vector<1x128xf32>
    %c24 = arith.constant 24 : index
    %136 = memref.load %arg2[%c24] : memref<40xf32, #tpu.memory_space<smem>>
    %137 = vector.broadcast %136 : f32 to vector<1x128xf32>
    %138 = arith.mulf %137, %4 : vector<1x128xf32>
    %139 = arith.addf %135, %138 : vector<1x128xf32>
    %cst_23 = arith.constant 0.000000e+00 : f32
    %140 = vector.broadcast %cst_23 : f32 to vector<1x128xf32>
    %141 = arith.maximumf %139, %140 : vector<1x128xf32>
    %c4_24 = arith.constant 4 : index
    %142 = memref.load %arg4[%c4_24] : memref<8xf32, #tpu.memory_space<smem>>
    %143 = vector.broadcast %142 : f32 to vector<1x128xf32>
    %144 = arith.mulf %143, %141 : vector<1x128xf32>
    %145 = arith.addf %117, %144 : vector<1x128xf32>
    %c5_25 = arith.constant 5 : index
    %146 = memref.load %arg3[%c5_25] : memref<8xf32, #tpu.memory_space<smem>>
    %147 = vector.broadcast %146 : f32 to vector<1x128xf32>
    %c25 = arith.constant 25 : index
    %148 = memref.load %arg2[%c25] : memref<40xf32, #tpu.memory_space<smem>>
    %149 = vector.broadcast %148 : f32 to vector<1x128xf32>
    %150 = arith.mulf %149, %0 : vector<1x128xf32>
    %151 = arith.addf %147, %150 : vector<1x128xf32>
    %c26 = arith.constant 26 : index
    %152 = memref.load %arg2[%c26] : memref<40xf32, #tpu.memory_space<smem>>
    %153 = vector.broadcast %152 : f32 to vector<1x128xf32>
    %154 = arith.mulf %153, %1 : vector<1x128xf32>
    %155 = arith.addf %151, %154 : vector<1x128xf32>
    %c27 = arith.constant 27 : index
    %156 = memref.load %arg2[%c27] : memref<40xf32, #tpu.memory_space<smem>>
    %157 = vector.broadcast %156 : f32 to vector<1x128xf32>
    %158 = arith.mulf %157, %2 : vector<1x128xf32>
    %159 = arith.addf %155, %158 : vector<1x128xf32>
    %c28 = arith.constant 28 : index
    %160 = memref.load %arg2[%c28] : memref<40xf32, #tpu.memory_space<smem>>
    %161 = vector.broadcast %160 : f32 to vector<1x128xf32>
    %162 = arith.mulf %161, %3 : vector<1x128xf32>
    %163 = arith.addf %159, %162 : vector<1x128xf32>
    %c29 = arith.constant 29 : index
    %164 = memref.load %arg2[%c29] : memref<40xf32, #tpu.memory_space<smem>>
    %165 = vector.broadcast %164 : f32 to vector<1x128xf32>
    %166 = arith.mulf %165, %4 : vector<1x128xf32>
    %167 = arith.addf %163, %166 : vector<1x128xf32>
    %cst_26 = arith.constant 0.000000e+00 : f32
    %168 = vector.broadcast %cst_26 : f32 to vector<1x128xf32>
    %169 = arith.maximumf %167, %168 : vector<1x128xf32>
    %c5_27 = arith.constant 5 : index
    %170 = memref.load %arg4[%c5_27] : memref<8xf32, #tpu.memory_space<smem>>
    %171 = vector.broadcast %170 : f32 to vector<1x128xf32>
    %172 = arith.mulf %171, %169 : vector<1x128xf32>
    %173 = arith.addf %145, %172 : vector<1x128xf32>
    %c6_28 = arith.constant 6 : index
    %174 = memref.load %arg3[%c6_28] : memref<8xf32, #tpu.memory_space<smem>>
    %175 = vector.broadcast %174 : f32 to vector<1x128xf32>
    %c30 = arith.constant 30 : index
    %176 = memref.load %arg2[%c30] : memref<40xf32, #tpu.memory_space<smem>>
    %177 = vector.broadcast %176 : f32 to vector<1x128xf32>
    %178 = arith.mulf %177, %0 : vector<1x128xf32>
    %179 = arith.addf %175, %178 : vector<1x128xf32>
    %c31 = arith.constant 31 : index
    %180 = memref.load %arg2[%c31] : memref<40xf32, #tpu.memory_space<smem>>
    %181 = vector.broadcast %180 : f32 to vector<1x128xf32>
    %182 = arith.mulf %181, %1 : vector<1x128xf32>
    %183 = arith.addf %179, %182 : vector<1x128xf32>
    %c32 = arith.constant 32 : index
    %184 = memref.load %arg2[%c32] : memref<40xf32, #tpu.memory_space<smem>>
    %185 = vector.broadcast %184 : f32 to vector<1x128xf32>
    %186 = arith.mulf %185, %2 : vector<1x128xf32>
    %187 = arith.addf %183, %186 : vector<1x128xf32>
    %c33 = arith.constant 33 : index
    %188 = memref.load %arg2[%c33] : memref<40xf32, #tpu.memory_space<smem>>
    %189 = vector.broadcast %188 : f32 to vector<1x128xf32>
    %190 = arith.mulf %189, %3 : vector<1x128xf32>
    %191 = arith.addf %187, %190 : vector<1x128xf32>
    %c34 = arith.constant 34 : index
    %192 = memref.load %arg2[%c34] : memref<40xf32, #tpu.memory_space<smem>>
    %193 = vector.broadcast %192 : f32 to vector<1x128xf32>
    %194 = arith.mulf %193, %4 : vector<1x128xf32>
    %195 = arith.addf %191, %194 : vector<1x128xf32>
    %cst_29 = arith.constant 0.000000e+00 : f32
    %196 = vector.broadcast %cst_29 : f32 to vector<1x128xf32>
    %197 = arith.maximumf %195, %196 : vector<1x128xf32>
    %c6_30 = arith.constant 6 : index
    %198 = memref.load %arg4[%c6_30] : memref<8xf32, #tpu.memory_space<smem>>
    %199 = vector.broadcast %198 : f32 to vector<1x128xf32>
    %200 = arith.mulf %199, %197 : vector<1x128xf32>
    %201 = arith.addf %173, %200 : vector<1x128xf32>
    %c7_31 = arith.constant 7 : index
    %202 = memref.load %arg3[%c7_31] : memref<8xf32, #tpu.memory_space<smem>>
    %203 = vector.broadcast %202 : f32 to vector<1x128xf32>
    %c35 = arith.constant 35 : index
    %204 = memref.load %arg2[%c35] : memref<40xf32, #tpu.memory_space<smem>>
    %205 = vector.broadcast %204 : f32 to vector<1x128xf32>
    %206 = arith.mulf %205, %0 : vector<1x128xf32>
    %207 = arith.addf %203, %206 : vector<1x128xf32>
    %c36 = arith.constant 36 : index
    %208 = memref.load %arg2[%c36] : memref<40xf32, #tpu.memory_space<smem>>
    %209 = vector.broadcast %208 : f32 to vector<1x128xf32>
    %210 = arith.mulf %209, %1 : vector<1x128xf32>
    %211 = arith.addf %207, %210 : vector<1x128xf32>
    %c37 = arith.constant 37 : index
    %212 = memref.load %arg2[%c37] : memref<40xf32, #tpu.memory_space<smem>>
    %213 = vector.broadcast %212 : f32 to vector<1x128xf32>
    %214 = arith.mulf %213, %2 : vector<1x128xf32>
    %215 = arith.addf %211, %214 : vector<1x128xf32>
    %c38 = arith.constant 38 : index
    %216 = memref.load %arg2[%c38] : memref<40xf32, #tpu.memory_space<smem>>
    %217 = vector.broadcast %216 : f32 to vector<1x128xf32>
    %218 = arith.mulf %217, %3 : vector<1x128xf32>
    %219 = arith.addf %215, %218 : vector<1x128xf32>
    %c39 = arith.constant 39 : index
    %220 = memref.load %arg2[%c39] : memref<40xf32, #tpu.memory_space<smem>>
    %221 = vector.broadcast %220 : f32 to vector<1x128xf32>
    %222 = arith.mulf %221, %4 : vector<1x128xf32>
    %223 = arith.addf %219, %222 : vector<1x128xf32>
    %cst_32 = arith.constant 0.000000e+00 : f32
    %224 = vector.broadcast %cst_32 : f32 to vector<1x128xf32>
    %225 = arith.maximumf %223, %224 : vector<1x128xf32>
    %c7_33 = arith.constant 7 : index
    %226 = memref.load %arg4[%c7_33] : memref<8xf32, #tpu.memory_space<smem>>
    %227 = vector.broadcast %226 : f32 to vector<1x128xf32>
    %228 = arith.mulf %227, %225 : vector<1x128xf32>
    %229 = arith.addf %201, %228 : vector<1x128xf32>
    %c0_34 = arith.constant 0 : index
    %230 = memref.load %arg5[%c0_34] : memref<1xf32, #tpu.memory_space<smem>>
    %231 = vector.broadcast %230 : f32 to vector<1x128xf32>
    %232 = arith.addf %229, %231 : vector<1x128xf32>
    %c0_35 = arith.constant 0 : index
    %c0_36 = arith.constant 0 : index
    %233 = vector.load %arg6[%c0_35, %c0_36] : memref<1x128xf32, #tpu.memory_space<vmem>>, vector<1x128xf32>
    tpu.vector_store %arg6[%c0_35, %c0_36], %232 {strides = array<i32>} : memref<1x128xf32, #tpu.memory_space<vmem>>, vector<1x128xf32>,
    return
  }
  func.func @transform_0(%arg0: i32) -> (i32, i32) {
    %c0_i32 = arith.constant 0 : i32
    %c0_i32_0 = arith.constant 0 : i32
    return %c0_i32, %arg0 : i32, i32
  }
  func.func @transform_1(%arg0: i32) -> i32 {
    %c0_i32 = arith.constant 0 : i32
    %c0_i32_0 = arith.constant 0 : i32
    return %c0_i32 : i32
  }
  func.func @transform_2(%arg0: i32) -> i32 {
    %c0_i32 = arith.constant 0 : i32
    %c0_i32_0 = arith.constant 0 : i32
    return %c0_i32 : i32
  }
  func.func @transform_3(%arg0: i32) -> i32 {
    %c0_i32 = arith.constant 0 : i32
    %c0_i32_0 = arith.constant 0 : i32
    return %c0_i32 : i32
  }
  func.func @transform_4(%arg0: i32) -> i32 {
    %c0_i32 = arith.constant 0 : i32
    %c0_i32_0 = arith.constant 0 : i32
    return %c0_i32 : i32
  }
  func.func @transform_5(%arg0: i32) -> (i32, i32) {
    %c0_i32 = arith.constant 0 : i32
    %c0_i32_0 = arith.constant 0 : i32
    return %c0_i32, %arg0 : i32, i32
  }
}

</mosaic_0001>

<llo_original>
// kernel: tpu_custom_call.1
$region0: #{tpu_custom_call.1}
  #allocation0 [shape = 'u32[]', space=smem, size = 0x4, offset = 0x4, fixed_abs, tag = 'smem constant byte address 0x4 - core index']
  #allocation1 [shape = 'u32[144,128]{1,0:T(1,128)}', space=vmem, size = 0x12000, scoped, tag = 'internal scratch']
  #allocation2 [shape = 'f32[1]{0:T(128)S(6)}', space=smem, size = 0x200, scoped, tag = 'scoped memory for tpu_custom_call.1']
  %s0 = inlined_call_operand.hbm [shape: f32[5,128], index: 0, kind: input, shape index: {}]
  %s1 = inlined_call_operand.vmem [shape: f32[40], index: 1, kind: input, shape index: {}]
  %s2 = inlined_call_operand.vmem [shape: f32[8], index: 2, kind: input, shape index: {}]
  %s3 = inlined_call_operand.vmem [shape: f32[8], index: 3, kind: input, shape index: {}]
  %s4 = inlined_call_operand.<no memory space> [shape: f32[1], index: 4, kind: input, shape index: {}]
  %s5 = inlined_call_operand.hbm [shape: f32[1,128], index: 5, kind: output, shape index: {}]
  %s6 = sld [smem:[#allocation0]]
  $region46: #{tpu_custom_call.1} parent=0
    _
  %s8 = ssub.s32 1, %s6
  %s9 = scalar_select 0, %s8, %s6
  %10 = sst [smem:[#allocation2]] %s4
  $region1: #{tpu_custom_call.1} parent=0
    #allocation3 [shape = 'u8[4096]{0}', space=vmem, size = 0x1000, scoped, tag = 'input window, operand 0, single buffered']
    #allocation4 [shape = 's32[1]{0}', space=sflag, size = 0x4, scoped, tag = 'scoped memory for tpu_custom_call.1']
    #allocation5 [shape = 's32[1]{0}', space=sflag, size = 0x4, scoped, tag = 'scoped memory for tpu_custom_call.1']
    #allocation6 [shape = 's32[1]{0}', space=sflag, size = 0x4, scoped, tag = 'scoped memory for tpu_custom_call.1']
    #allocation7 [shape = 'u8[512]{0}', space=smem, size = 0x200, scoped, tag = 'input window, operand 1, single buffered']
    #allocation8 [shape = 'u8[512]{0}', space=smem, size = 0x200, scoped, tag = 'input window, operand 2, single buffered']
    #allocation9 [shape = 's32[1]{0}', space=sflag, size = 0x4, scoped, tag = 'scoped memory for tpu_custom_call.1']
    #allocation10 [shape = 'u8[512]{0}', space=smem, size = 0x200, scoped, tag = 'input window, operand 3, single buffered']
    #allocation11 [shape = 'u8[512]{0}', space=vmem, size = 0x400, scoped, tag = 'output window, operand 0, single buffered']
    %11 = vsyncpa [#allocation4], 0
    %12 = vsyncpa [#allocation6], 0
    %13 = vsyncpa [#allocation9], 0
    %14 = vsyncpa [#allocation5], 0
    // Predicated region
    $region2: #{tpu_custom_call.1} parent=1 // pred_check
      _
    $region3: #{tpu_custom_call.1} parent=1 // pred_check_branch
      %16 = sbr.rel (0) target = $region5
    $region4: #{tpu_custom_call.1} parent=1 // pred_region
      %s18 = ssub.s32 128, 128
      %19 = vsyncadd [#allocation4], %s18
      %s21 = sshll.u32 [#allocation3], 4
      %s22 = int_to_ptr.vmem [resolvable:$true] %s21
      %24 = dma.hbm_to_vmem [thread:$0]  %s0, 128, %s22, [#allocation4]
    $region5: #{tpu_custom_call.1} parent=1 // pred_fallthru
      _
    // Predicated region
    $region6: #{tpu_custom_call.1} parent=1 // pred_check
      _
    $region7: #{tpu_custom_call.1} parent=1 // pred_check_branch
      %26 = sbr.rel (0) target = $region9
    $region8: #{tpu_custom_call.1} parent=1 // pred_region
      %s28 = ssub.s32 16, 16
      %29 = vsyncadd [#allocation6], %s28
      %s31 = sshll.u32 %s1, 4
      %s32 = int_to_ptr.vmem [resolvable:$true] %s31
      %34 = dma.vmem_to_smem %s32, 16, [#allocation7], [#allocation6]
    $region9: #{tpu_custom_call.1} parent=1 // pred_fallthru
      _
    // Predicated region
    $region10: #{tpu_custom_call.1} parent=1 // pred_check
      _
    $region11: #{tpu_custom_call.1} parent=1 // pred_check_branch
      %36 = sbr.rel (0) target = $region13
    $region12: #{tpu_custom_call.1} parent=1 // pred_region
      %s38 = ssub.s32 16, 16
      %39 = vsyncadd [#allocation9], %s38
      %s41 = sshll.u32 %s2, 4
      %s42 = int_to_ptr.vmem [resolvable:$true] %s41
      %44 = dma.vmem_to_smem %s42, 16, [#allocation8], [#allocation9]
    $region13: #{tpu_custom_call.1} parent=1 // pred_fallthru
      _
    // Predicated region
    $region14: #{tpu_custom_call.1} parent=1 // pred_check
      _
    $region15: #{tpu_custom_call.1} parent=1 // pred_check_branch
      %46 = sbr.rel (0) target = $region17
    $region16: #{tpu_custom_call.1} parent=1 // pred_region
      %s48 = ssub.s32 16, 16
      %49 = vsyncadd [#allocation9], %s48
      %s51 = sshll.u32 %s3, 4
      %s52 = int_to_ptr.vmem [resolvable:$true] %s51
      %54 = dma.vmem_to_smem %s52, 16, [#allocation10], [#allocation9]
    $region17: #{tpu_custom_call.1} parent=1 // pred_fallthru
      _
    // Predicated region
    $region18: #{tpu_custom_call.1} parent=1 // pred_check
      _
    $region19: #{tpu_custom_call.1} parent=1 // pred_check_branch
      %56 = sbr.rel (0) target = $region21
    $region20: #{tpu_custom_call.1} parent=1 // pred_region
      _
    $region21: #{tpu_custom_call.1} parent=1 // pred_fallthru
      _
    // Predicated region
    $region22: #{tpu_custom_call.1} parent=1 // pred_check
      _
    $region23: #{tpu_custom_call.1} parent=1 // pred_check_branch
      %58 = sbr.rel (0) target = $region25
    $region24: #{tpu_custom_call.1} parent=1 // pred_region
      %59 = dma.done [#allocation4], 128
    $region25: #{tpu_custom_call.1} parent=1 // pred_fallthru
      _
    // Predicated region
    $region26: #{tpu_custom_call.1} parent=1 // pred_check
      _
    $region27: #{tpu_custom_call.1} parent=1 // pred_check_branch
      %61 = sbr.rel (0) target = $region29
    $region28: #{tpu_custom_call.1} parent=1 // pred_region
      %62 = dma.done [#allocation6], 16
    $region29: #{tpu_custom_call.1} parent=1 // pred_fallthru
      _
    // Predicated region
    $region30: #{tpu_custom_call.1} parent=1 // pred_check
      _
    $region31: #{tpu_custom_call.1} parent=1 // pred_check_branch
      %64 = sbr.rel (0) target = $region33
    $region32: #{tpu_custom_call.1} parent=1 // pred_region
      %65 = dma.done [#allocation9], 16
    $region33: #{tpu_custom_call.1} parent=1 // pred_fallthru
      _
    // Predicated region
    $region34: #{tpu_custom_call.1} parent=1 // pred_check
      _
    $region35: #{tpu_custom_call.1} parent=1 // pred_check_branch
      %67 = sbr.rel (0) target = $region37
    $region36: #{tpu_custom_call.1} parent=1 // pred_region
      %68 = dma.done [#allocation9], 16
    $region37: #{tpu_custom_call.1} parent=1 // pred_fallthru
      _
    %69 = sfence
    %v70 = vld [vmem:[#allocation3] sm:$0x1]
    %v71 = vld [vmem:[#allocation3 + $0x1] sm:$0x1]
    %v72 = vld [vmem:[#allocation3 + $0x2] sm:$0x1]
    %v73 = vld [vmem:[#allocation3 + $0x3] sm:$0x1]
    %v74 = vld [vmem:[#allocation3 + $0x4] sm:$0x1]
    %s75 = sld [smem:[#allocation8]]
    %v76 = vstv %s75
    %s77 = sld [smem:[#allocation7]]
    %v78 = vstv %s77
    %v79 = vmul.f32 %v78, %v70
    %v80 = vadd.f32 %v76, %v79
    %s81 = sld [smem:[#allocation7 + $0x1]]
    %v82 = vstv %s81
    %v83 = vmul.f32 %v82, %v71
    %v84 = vadd.f32 %v80, %v83
    %s85 = sld [smem:[#allocation7 + $0x2]]
    %v86 = vstv %s85
    %v87 = vmul.f32 %v86, %v72
    %v88 = vadd.f32 %v84, %v87
    %s89 = sld [smem:[#allocation7 + $0x3]]
    %v90 = vstv %s89
    %v91 = vmul.f32 %v90, %v73
    %v92 = vadd.f32 %v88, %v91
    %s93 = sld [smem:[#allocation7 + $0x4]]
    %v94 = vstv %s93
    %v95 = vmul.f32 %v94, %v74
    %v96 = vadd.f32 %v92, %v95
    %v97 = vmax.f32 %v96, 0.0
    %s98 = sld [smem:[#allocation10]]
    %v99 = vstv %s98
    %v100 = vmul.f32 %v99, %v97
    %v101 = vadd.f32 %v100, 0.0
    %s102 = sld [smem:[#allocation8 + $0x1]]
    %v103 = vstv %s102
    %s104 = sld [smem:[#allocation7 + $0x5]]
    %v105 = vstv %s104
    %v106 = vmul.f32 %v105, %v70
    %v107 = vadd.f32 %v103, %v106
    %s108 = sld [smem:[#allocation7 + $0x6]]
    %v109 = vstv %s108
    %v110 = vmul.f32 %v109, %v71
    %v111 = vadd.f32 %v107, %v110
    %s112 = sld [smem:[#allocation7 + $0x7]]
    %v113 = vstv %s112
    %v114 = vmul.f32 %v113, %v72
    %v115 = vadd.f32 %v111, %v114
    %s116 = sld [smem:[#allocation7 + $0x8]]
    %v117 = vstv %s116
    %v118 = vmul.f32 %v117, %v73
    %v119 = vadd.f32 %v115, %v118
    %s120 = sld [smem:[#allocation7 + $0x9]]
    %v121 = vstv %s120
    %v122 = vmul.f32 %v121, %v74
    %v123 = vadd.f32 %v119, %v122
    %v124 = vmax.f32 %v123, 0.0
    %s125 = sld [smem:[#allocation10 + $0x1]]
    %v126 = vstv %s125
    %v127 = vmul.f32 %v126, %v124
    %v128 = vadd.f32 %v101, %v127
    %s129 = sld [smem:[#allocation8 + $0x2]]
    %v130 = vstv %s129
    %s131 = sld [smem:[#allocation7 + $0xa]]
    %v132 = vstv %s131
    %v133 = vmul.f32 %v132, %v70
    %v134 = vadd.f32 %v130, %v133
    %s135 = sld [smem:[#allocation7 + $0xb]]
    %v136 = vstv %s135
    %v137 = vmul.f32 %v136, %v71
    %v138 = vadd.f32 %v134, %v137
    %s139 = sld [smem:[#allocation7 + $0xc]]
    %v140 = vstv %s139
    %v141 = vmul.f32 %v140, %v72
    %v142 = vadd.f32 %v138, %v141
    %s143 = sld [smem:[#allocation7 + $0xd]]
    %v144 = vstv %s143
    %v145 = vmul.f32 %v144, %v73
    %v146 = vadd.f32 %v142, %v145
    %s147 = sld [smem:[#allocation7 + $0xe]]
    %v148 = vstv %s147
    %v149 = vmul.f32 %v148, %v74
    %v150 = vadd.f32 %v146, %v149
    %v151 = vmax.f32 %v150, 0.0
    %s152 = sld [smem:[#allocation10 + $0x2]]
    %v153 = vstv %s152
    %v154 = vmul.f32 %v153, %v151
    %v155 = vadd.f32 %v128, %v154
    %s156 = sld [smem:[#allocation8 + $0x3]]
    %v157 = vstv %s156
    %s158 = sld [smem:[#allocation7 + $0xf]]
    %v159 = vstv %s158
    %v160 = vmul.f32 %v159, %v70
    %v161 = vadd.f32 %v157, %v160
    %s162 = sld [smem:[#allocation7 + $0x10]]
    %v163 = vstv %s162
    %v164 = vmul.f32 %v163, %v71
    %v165 = vadd.f32 %v161, %v164
    %s166 = sld [smem:[#allocation7 + $0x11]]
    %v167 = vstv %s166
    %v168 = vmul.f32 %v167, %v72
    %v169 = vadd.f32 %v165, %v168
    %s170 = sld [smem:[#allocation7 + $0x12]]
    %v171 = vstv %s170
    %v172 = vmul.f32 %v171, %v73
    %v173 = vadd.f32 %v169, %v172
    %s174 = sld [smem:[#allocation7 + $0x13]]
    %v175 = vstv %s174
    %v176 = vmul.f32 %v175, %v74
    %v177 = vadd.f32 %v173, %v176
    %v178 = vmax.f32 %v177, 0.0
    %s179 = sld [smem:[#allocation10 + $0x3]]
    %v180 = vstv %s179
    %v181 = vmul.f32 %v180, %v178
    %v182 = vadd.f32 %v155, %v181
    %s183 = sld [smem:[#allocation8 + $0x4]]
    %v184 = vstv %s183
    %s185 = sld [smem:[#allocation7 + $0x14]]
    %v186 = vstv %s185
    %v187 = vmul.f32 %v186, %v70
    %v188 = vadd.f32 %v184, %v187
    %s189 = sld [smem:[#allocation7 + $0x15]]
    %v190 = vstv %s189
    %v191 = vmul.f32 %v190, %v71
    %v192 = vadd.f32 %v188, %v191
    %s193 = sld [smem:[#allocation7 + $0x16]]
    %v194 = vstv %s193
    %v195 = vmul.f32 %v194, %v72
    %v196 = vadd.f32 %v192, %v195
    %s197 = sld [smem:[#allocation7 + $0x17]]
    %v198 = vstv %s197
    %v199 = vmul.f32 %v198, %v73
    %v200 = vadd.f32 %v196, %v199
    %s201 = sld [smem:[#allocation7 + $0x18]]
    %v202 = vstv %s201
    %v203 = vmul.f32 %v202, %v74
    %v204 = vadd.f32 %v200, %v203
    %v205 = vmax.f32 %v204, 0.0
    %s206 = sld [smem:[#allocation10 + $0x4]]
    %v207 = vstv %s206
    %v208 = vmul.f32 %v207, %v205
    %v209 = vadd.f32 %v182, %v208
    %s210 = sld [smem:[#allocation8 + $0x5]]
    %v211 = vstv %s210
    %s212 = sld [smem:[#allocation7 + $0x19]]
    %v213 = vstv %s212
    %v214 = vmul.f32 %v213, %v70
    %v215 = vadd.f32 %v211, %v214
    %s216 = sld [smem:[#allocation7 + $0x1a]]
    %v217 = vstv %s216
    %v218 = vmul.f32 %v217, %v71
    %v219 = vadd.f32 %v215, %v218
    %s220 = sld [smem:[#allocation7 + $0x1b]]
    %v221 = vstv %s220
    %v222 = vmul.f32 %v221, %v72
    %v223 = vadd.f32 %v219, %v222
    %s224 = sld [smem:[#allocation7 + $0x1c]]
    %v225 = vstv %s224
    %v226 = vmul.f32 %v225, %v73
    %v227 = vadd.f32 %v223, %v226
    %s228 = sld [smem:[#allocation7 + $0x1d]]
    %v229 = vstv %s228
    %v230 = vmul.f32 %v229, %v74
    %v231 = vadd.f32 %v227, %v230
    %v232 = vmax.f32 %v231, 0.0
    %s233 = sld [smem:[#allocation10 + $0x5]]
    %v234 = vstv %s233
    %v235 = vmul.f32 %v234, %v232
    %v236 = vadd.f32 %v209, %v235
    %s237 = sld [smem:[#allocation8 + $0x6]]
    %v238 = vstv %s237
    %s239 = sld [smem:[#allocation7 + $0x1e]]
    %v240 = vstv %s239
    %v241 = vmul.f32 %v240, %v70
    %v242 = vadd.f32 %v238, %v241
    %s243 = sld [smem:[#allocation7 + $0x1f]]
    %v244 = vstv %s243
    %v245 = vmul.f32 %v244, %v71
    %v246 = vadd.f32 %v242, %v245
    %s247 = sld [smem:[#allocation7 + $0x20]]
    %v248 = vstv %s247
    %v249 = vmul.f32 %v248, %v72
    %v250 = vadd.f32 %v246, %v249
    %s251 = sld [smem:[#allocation7 + $0x21]]
    %v252 = vstv %s251
    %v253 = vmul.f32 %v252, %v73
    %v254 = vadd.f32 %v250, %v253
    %s255 = sld [smem:[#allocation7 + $0x22]]
    %v256 = vstv %s255
    %v257 = vmul.f32 %v256, %v74
    %v258 = vadd.f32 %v254, %v257
    %v259 = vmax.f32 %v258, 0.0
    %s260 = sld [smem:[#allocation10 + $0x6]]
    %v261 = vstv %s260
    %v262 = vmul.f32 %v261, %v259
    %v263 = vadd.f32 %v236, %v262
    %s264 = sld [smem:[#allocation8 + $0x7]]
    %v265 = vstv %s264
    %s266 = sld [smem:[#allocation7 + $0x23]]
    %v267 = vstv %s266
    %v268 = vmul.f32 %v267, %v70
    %v269 = vadd.f32 %v265, %v268
    %s270 = sld [smem:[#allocation7 + $0x24]]
    %v271 = vstv %s270
    %v272 = vmul.f32 %v271, %v71
    %v273 = vadd.f32 %v269, %v272
    %s274 = sld [smem:[#allocation7 + $0x25]]
    %v275 = vstv %s274
    %v276 = vmul.f32 %v275, %v72
    %v277 = vadd.f32 %v273, %v276
    %s278 = sld [smem:[#allocation7 + $0x26]]
    %v279 = vstv %s278
    %v280 = vmul.f32 %v279, %v73
    %v281 = vadd.f32 %v277, %v280
    %s282 = sld [smem:[#allocation7 + $0x27]]
    %v283 = vstv %s282
    %v284 = vmul.f32 %v283, %v74
    %v285 = vadd.f32 %v281, %v284
    %v286 = vmax.f32 %v285, 0.0
    %s287 = sld [smem:[#allocation10 + $0x7]]
    %v288 = vstv %s287
    %v289 = vmul.f32 %v288, %v286
    %v290 = vadd.f32 %v263, %v289
    %s291 = sld [smem:[#allocation2]]
    %v292 = vstv %s291
    %v293 = vadd.f32 %v290, %v292
    %294 = vst [vmem:[#allocation11] sm:$0x1] %v293
    // Predicated region
    $region38: #{tpu_custom_call.1} parent=1 // pred_check
      _
    $region39: #{tpu_custom_call.1} parent=1 // pred_check_branch
      %296 = sbr.rel (0) target = $region41
    $region40: #{tpu_custom_call.1} parent=1 // pred_region
      %s298 = ssub.s32 16, 16
      %299 = vsyncadd [#allocation5], %s298
      %s301 = sshll.u32 [#allocation11], 4
      %s302 = int_to_ptr.vmem [resolvable:$true] %s301
      %304 = dma.vmem_to_hbm [thread:$0]  %s302, 16, %s5, [#allocation5]
    $region41: #{tpu_custom_call.1} parent=1 // pred_fallthru
      _
    // Predicated region
    $region42: #{tpu_custom_call.1} parent=1 // pred_check
      _
    $region43: #{tpu_custom_call.1} parent=1 // pred_check_branch
      %306 = sbr.rel (0) target = $region45
    $region44: #{tpu_custom_call.1} parent=1 // pred_region
      %307 = dma.done [#allocation5], 16
    $region45: #{tpu_custom_call.1} parent=1 // pred_fallthru
      _
    %308 = vsyncpa [#allocation4], 1
    %309 = vsyncpa [#allocation5], 1
    %310 = vsyncpa [#allocation6], 1
    %311 = vsyncpa [#allocation9], 1

</llo_original>
